<compile_context>
chip_gen: v5e
topology: v5e:2x2
jax: 0.10.0
libtpu: 0.0.40
codegen_flags: <defaults>
</compile_context>

<pallas_src>
import jax
import jax.numpy as jnp
from jax.experimental import pallas as pl
from jax.experimental.pallas import tpu as pltpu

KERNEL_SIZE = 7      # spatial-attention conv taps (and the stride-7 conv1 kernel)
PAD = 3              # padding for the k=7 spatial-attention conv
BN_EPS = 1e-5
LANE = 128


def _base_block2_kernel(x_ref, w_ref, shift_ref, fc1_ref, fc2_ref, wsa_ref,
                        o_ref, h_sc):
    """One batch tile.

    x_ref     (CK, TB*L2)  im2col'd input slab, bf16 (batch folded into lanes)
    w_ref     (P, CK)      conv1 weight with BN scale folded in, bf16
    shift_ref (P, 1)       conv1 bias + BN shift folded, f32
    fc1_ref   (P, R)       channel-attention fc1 (transposed), f32
    fc2_ref   (P, R)       channel-attention fc2, f32
    wsa_ref   (14,)        spatial-attention taps in SMEM: [w_avg/P (7), w_max (7)]
    o_ref     (TB, P, L2)  output tile
    h_sc      (P, TB*L2)   f32 VMEM scratch staging conv+BN+ReLU
    """
    tb, p, l2 = o_ref.shape
    r = fc1_ref.shape[1]

    # --- conv1 (k=7, stride=7) + folded BN + ReLU: ONE matmul for the whole
    #     batch tile, streamed straight into the VMEM scratch. ---------------
    h = jnp.dot(w_ref[...], x_ref[...], preferred_element_type=jnp.float32)
    h_sc[...] = jnp.maximum(h + shift_ref[...], 0.0)

    fc1 = fc1_ref[...]                                        # (P, R)
    fc2 = fc2_ref[...]                                        # (P, R)
    taps = [wsa_ref[i] for i in range(2 * KERNEL_SIZE)]       # hoisted SMEM reads
    idx = jax.lax.broadcasted_iota(jnp.int32, (1, l2), 1)
    valid_k = [jnp.logical_and(idx + (k - PAD) >= 0, idx + (k - PAD) < l2)
               for k in range(KERNEL_SIZE)]

    # Per-batch-row epilogue on lane-aligned (P, L2) slices of the scratch.
    for b in range(tb):
        hb = h_sc[:, pl.ds(b * l2, l2)]                       # (P, L2) f32

        # --- ChannelAttention: avg/max over L2, tiny MLP on the VPU (an MXU
        #     dot would pad K to 128 and stall on the drain for ~no work). ---
        avg_c = jnp.mean(hb, axis=1, keepdims=True)           # (P, 1)
        max_c = jnp.max(hb, axis=1, keepdims=True)            # (P, 1)
        proj = jnp.zeros((p, 1), jnp.float32)
        for j in range(r):
            w1 = fc1[:, j:j + 1]                              # (P, 1)
            a = jnp.maximum(jnp.sum(avg_c * w1, axis=0, keepdims=True), 0.0)
            m = jnp.maximum(jnp.sum(max_c * w1, axis=0, keepdims=True), 0.0)
            proj = proj + fc2[:, j:j + 1] * (a + m)           # fc2 is linear, bias-free
        hcb = hb * jax.nn.sigmoid(proj)                       # CA applied   (P, L2)

        # --- SpatialAttention: channel sum (1/P folded into taps) + channel
        #     max, 7-tap conv along L2 via lane rolls + zero-pad masking. ----
        s_sum = jnp.sum(hcb, axis=0, keepdims=True)           # (1, L2)
        s_max = jnp.max(hcb, axis=0, keepdims=True)           # (1, L2)
        feat = jnp.concatenate([s_sum, s_max], axis=0)        # (2, L2)
        acc = jnp.zeros((1, l2), jnp.float32)
        for k in range(KERNEL_SIZE):
            d = k - PAD
            rolled = pltpu.roll(feat, shift=(-d) % l2, axis=1)   # [:, t] = feat[:, t+d]
            contrib = taps[k] * rolled[0:1] + taps[KERNEL_SIZE + k] * rolled[1:2]
            acc = acc + jnp.where(valid_k[k], contrib, 0.0)
        sa = jax.nn.sigmoid(acc)                              # (1, L2)

        o_ref[b] = (hcb * sa).astype(o_ref.dtype)


def base_block2(x, params, *, stride=7):
    """Fused BaseBlock2 forward.  x: (B, Cin, L) -> (B, P, L2), L2=(L-7)//stride+1."""
    conv_w, conv_b, gamma, beta, run_mean, run_var, fc1_w, fc2_w, sa_w = params
    B, cin, L = x.shape
    P, cin2, K = conv_w.shape
    assert cin2 == cin and K == KERNEL_SIZE
    R = fc1_w.shape[0]
    L2 = (L - K) // stride + 1
    CK = cin * K

    # ---- im2col without a gather; bf16 cast fused into the same copy pass ---
    # xr[c*K + k, b*L2 + t] = x[b, c, t*stride + k]
    if stride == K:  # non-overlapping windows -> pure reshape/transpose
        win = x[:, :, :L2 * K].reshape(B, cin, L2, K).transpose(1, 3, 0, 2)
    else:            # general stride: one strided slice per tap (still no gather)
        cols = jnp.stack(
            [x[:, :, k:k + stride * (L2 - 1) + 1:stride] for k in range(K)], axis=2)
        win = cols.transpose(1, 2, 0, 3)                       # (cin, K, B, L2)
    xr = win.reshape(CK, B * L2).astype(jnp.bfloat16)

    # Fold inference BatchNorm + conv bias into the matmul weight / shift.
    # TODO(synk): training-mode BatchNorm (batch statistics) is not implemented;
    # it would need a cross-batch-tile reduction pass.
    scale = gamma * jax.lax.rsqrt(run_var + BN_EPS)                       # (P,)
    w_fold = (conv_w.reshape(P, CK) * scale[:, None]).astype(jnp.bfloat16)
    shift = (scale * (conv_b - run_mean) + beta).reshape(P, 1).astype(jnp.float32)

    fc1_t = fc1_w.T.astype(jnp.float32)                                   # (P, R)
    fc2_m = fc2_w.astype(jnp.float32)                                     # (P, R)
    # Spatial-attention taps, flat 1-D for SMEM; 1/P of the channel mean folded
    # into the first 7 taps so the kernel only needs a channel sum.
    wsa = jnp.concatenate([sa_w[0, 0] / P, sa_w[0, 1]]).astype(jnp.float32)

    # ---- batch tile size: generation-aware VMEM budget, >= ~8 grid steps so
    #      dual-TensorCore chips get >= 4 pipelined steps per core, vreg cap,
    #      unroll cap. --------------------------------------------------------
    try:
        vmem_cap = int(pltpu.get_tpu_info().vmem_capacity_bytes)
    except Exception:
        vmem_cap = 64 << 20                       # v7x-safe fallback
    budget = (vmem_cap * 3) // 4                  # ~48 MiB on v7x, ~96 MiB on v5e/v6e

    out_bytes = jnp.dtype(x.dtype).itemsize
    per_b = 2 * CK * L2 * 2 + 2 * P * L2 * out_bytes + P * L2 * 4   # dbl-buf in/out + scratch
    fixed = 2 * (P * CK * 2 + P * 4 + 2 * P * R * 4) + (2 << 20)    # weights + margin
    tb_vmem = max(1, (budget - fixed) // per_b)
    tb_vreg = max(1, (128 * 1024) // (P * L2 * 4))  # keep matmul-drain live set <= ~half vreg file

    if L2 % LANE == 0:
        tb = int(max(1, min(tb_vmem, tb_vreg, pl.cdiv(B, 8), 16)))
    else:
        # TODO(synk): L2 not a multiple of 128 -> the input block's lane dim must
        # equal the full array dim; fall back to a single grid step.
        tb = B
    bp = pl.cdiv(B, tb) * tb
    if bp != B:
        xr = jnp.pad(xr, ((0, 0), (0, (bp - B) * L2)))

    vmem_limit = int(min(budget, max(fixed + tb * per_b + (4 << 20), 16 << 20)))

    out = pl.pallas_call(
        _base_block2_kernel,
        out_shape=jax.ShapeDtypeStruct((bp, P, L2), x.dtype),
        grid_spec=pltpu.PrefetchScalarGridSpec(
            num_scalar_prefetch=0,
            grid=(bp // tb,),
            in_specs=[
                pl.BlockSpec((CK, tb * L2), lambda b: (0, b)),      # input slab
                pl.BlockSpec((P, CK), lambda b: (0, 0)),            # folded conv weight
                pl.BlockSpec((P, 1), lambda b: (0, 0)),             # folded bias/shift
                pl.BlockSpec((P, R), lambda b: (0, 0)),             # CA fc1 (transposed)
                pl.BlockSpec((P, R), lambda b: (0, 0)),             # CA fc2
                pl.BlockSpec(memory_space=pltpu.MemorySpace.SMEM),  # SA taps (scalars)
            ],
            out_specs=pl.BlockSpec((tb, P, L2), lambda b: (b, 0, 0)),
            scratch_shapes=[pltpu.VMEM((P, tb * L2), jnp.float32)],
        ),
        compiler_params=pltpu.CompilerParams(
            dimension_semantics=("parallel",),
            vmem_limit_bytes=vmem_limit,
        ),
    )(xr, w_fold, shift, fc1_t, fc2_m, wsa)
    return out[:B]


def _reference(x, params, *, stride=7):
    """Pure-JAX reference of the PyTorch BaseBlock2 forward (inference-mode BN)."""
    conv_w, conv_b, gamma, beta, run_mean, run_var, fc1_w, fc2_w, sa_w = params
    hp = jax.lax.Precision.HIGHEST
    out = jax.lax.conv_general_dilated(
        x, conv_w, window_strides=(stride,), padding="VALID",
        dimension_numbers=("NCH", "OIH", "NCH"), precision=hp)
    out = out + conv_b[None, :, None]
    scale = gamma * jax.lax.rsqrt(run_var + BN_EPS)
    out = scale[None, :, None] * (out - run_mean[None, :, None]) + beta[None, :, None]
    out = jnp.maximum(out, 0.0)
    # ChannelAttention
    avg = jnp.mean(out, axis=2)
    mx = jnp.max(out, axis=2)

    def mlp(v):
        return jnp.maximum(v @ fc1_w.T, 0.0) @ fc2_w.T

    ca = jax.nn.sigmoid(mlp(avg) + mlp(mx))
    out = out * ca[:, :, None]
    # SpatialAttention
    feat = jnp.concatenate(
        [jnp.mean(out, axis=1, keepdims=True), jnp.max(out, axis=1, keepdims=True)],
        axis=1)
    sa = jax.lax.conv_general_dilated(
        feat, sa_w, window_strides=(1,), padding=[(PAD, PAD)],
        dimension_numbers=("NCH", "OIH", "NCH"), precision=hp)
    return out * jax.nn.sigmoid(sa)


if __name__ == "__main__":
    key = jax.random.PRNGKey(0)
    ks = jax.random.split(key, 10)

    B, Cin, P, K, stride = 8, 4, 32, 7, 7
    L2 = 128
    L = (L2 - 1) * stride + K          # 896 -> conv output length 128
    R = P // 16

    x = jax.random.normal(ks[0], (B, Cin, L), dtype=jnp.float32)

    lim = (Cin * K) ** -0.5
    conv_w = jax.random.uniform(ks[1], (P, Cin, K), jnp.float32, minval=-lim, maxval=lim)
    conv_b = jax.random.uniform(ks[2], (P,), jnp.float32, minval=-lim, maxval=lim)
    gamma = 1.0 + 0.1 * jax.random.normal(ks[3], (P,), jnp.float32)
    beta = 0.1 * jax.random.normal(ks[4], (P,), jnp.float32)
    run_mean = 0.1 * jax.random.normal(ks[5], (P,), jnp.float32)
    run_var = jax.random.uniform(ks[6], (P,), jnp.float32, minval=0.5, maxval=1.5)
    lim1 = P ** -0.5
    fc1_w = jax.random.uniform(ks[7], (R, P), jnp.float32, minval=-lim1, maxval=lim1)
    lim2 = R ** -0.5
    fc2_w = jax.random.uniform(ks[8], (P, R), jnp.float32, minval=-lim2, maxval=lim2)
    lim3 = (2 * K) ** -0.5
    sa_w = jax.random.uniform(ks[9], (1, 2, K), jnp.float32, minval=-lim3, maxval=lim3)

    params = (conv_w, conv_b, gamma, beta, run_mean, run_var, fc1_w, fc2_w, sa_w)

    out = base_block2(x, params, stride=stride)
    out = jax.block_until_ready(out)

    ref = _reference(x, params, stride=stride)
    assert out.shape == (B, P, L2), out.shape
    # bf16 conv inputs (perf optimization) cost ~<1e-2 max-abs vs the f32 reference.
    err = float(jnp.max(jnp.abs(out - ref)))
    assert err < 2e-2, err

    print("KERNEL_OK")
</pallas_src>

<mosaic_0001>
module attributes {stable_mosaic.version = 11 : i64} {
  func.func @_base_block2_kernel(%arg0: i32, %arg1: memref<28x128xbf16, #tpu.memory_space<vmem>>, %arg2: memref<32x28xbf16, #tpu.memory_space<vmem>>, %arg3: memref<32x1xf32, #tpu.memory_space<vmem>>, %arg4: memref<32x2xf32, #tpu.memory_space<vmem>>, %arg5: memref<32x2xf32, #tpu.memory_space<vmem>>, %arg6: memref<14xf32, #tpu.memory_space<smem>>, %arg7: memref<1x32x128xf32, #tpu.memory_space<vmem>>, %arg8: memref<32x128xf32, #tpu.memory_space<vmem>>) attributes {dimension_semantics = [#tpu.dimension_semantics<parallel>], iteration_bounds = array<i64: 8>, scalar_prefetch = 0 : i64, scratch_operands = 1 : i64, tpu.core_type = #tpu.core_type<tc>, window_params = [{transform_indices = @transform_0, window_bounds = array<i64: 28, 128>}, {pipeline_mode = #tpu.pipeline_mode<synchronous>, transform_indices = @transform_1, window_bounds = array<i64: 32, 28>}, {pipeline_mode = #tpu.pipeline_mode<synchronous>, transform_indices = @transform_2, window_bounds = array<i64: 32, 1>}, {pipeline_mode = #tpu.pipeline_mode<synchronous>, transform_indices = @transform_3, window_bounds = array<i64: 32, 2>}, {pipeline_mode = #tpu.pipeline_mode<synchronous>, transform_indices = @transform_4, window_bounds = array<i64: 32, 2>}, {transform_indices = @transform_5, window_bounds = array<i64: 14>}, {transform_indices = @transform_6, window_bounds = array<i64: 1, 32, 128>}]} {
    %c0 = arith.constant 0 : index
    %c0_0 = arith.constant 0 : index
    %0 = vector.load %arg2[%c0, %c0_0] : memref<32x28xbf16, #tpu.memory_space<vmem>>, vector<32x28xbf16>
    %c0_1 = arith.constant 0 : index
    %c0_2 = arith.constant 0 : index
    %1 = vector.load %arg1[%c0_1, %c0_2] : memref<28x128xbf16, #tpu.memory_space<vmem>>, vector<28x128xbf16>
    %cst = arith.constant dense<0.000000e+00> : vector<32x128xf32>
    %2 = tpu.matmul %0, %1, %cst {dimension_numbers = #tpu.dot_dimension_numbers<[1], [0], [0], [1], [0, 0, 1, 1], [], []>} : vector<32x28xbf16>, vector<28x128xbf16>, vector<32x128xf32> -> vector<32x128xf32>
    %c0_3 = arith.constant 0 : index
    %c0_4 = arith.constant 0 : index
    %3 = vector.load %arg3[%c0_3, %c0_4] : memref<32x1xf32, #tpu.memory_space<vmem>>, vector<32x1xf32>
    %4 = vector.broadcast %3 : vector<32x1xf32> to vector<32x128xf32>
    %5 = arith.addf %2, %4 : vector<32x128xf32>
    %cst_5 = arith.constant 0.000000e+00 : f32
    %6 = vector.broadcast %cst_5 : f32 to vector<32x128xf32>
    %7 = arith.maximumf %5, %6 : vector<32x128xf32>
    %c0_6 = arith.constant 0 : index
    %c0_7 = arith.constant 0 : index
    %8 = vector.load %arg8[%c0_6, %c0_7] : memref<32x128xf32, #tpu.memory_space<vmem>>, vector<32x128xf32>
    tpu.vector_store %arg8[%c0_6, %c0_7], %7 {strides = array<i32>} : memref<32x128xf32, #tpu.memory_space<vmem>>, vector<32x128xf32>,
    %c0_8 = arith.constant 0 : index
    %c0_9 = arith.constant 0 : index
    %9 = vector.load %arg4[%c0_8, %c0_9] : memref<32x2xf32, #tpu.memory_space<vmem>>, vector<32x2xf32>
    %c0_10 = arith.constant 0 : index
    %c0_11 = arith.constant 0 : index
    %10 = vector.load %arg5[%c0_10, %c0_11] : memref<32x2xf32, #tpu.memory_space<vmem>>, vector<32x2xf32>
    %c0_12 = arith.constant 0 : index
    %11 = memref.load %arg6[%c0_12] : memref<14xf32, #tpu.memory_space<smem>>
    %c1 = arith.constant 1 : index
    %12 = memref.load %arg6[%c1] : memref<14xf32, #tpu.memory_space<smem>>
    %c2 = arith.constant 2 : index
    %13 = memref.load %arg6[%c2] : memref<14xf32, #tpu.memory_space<smem>>
    %c3 = arith.constant 3 : index
    %14 = memref.load %arg6[%c3] : memref<14xf32, #tpu.memory_space<smem>>
    %c4 = arith.constant 4 : index
    %15 = memref.load %arg6[%c4] : memref<14xf32, #tpu.memory_space<smem>>
    %c5 = arith.constant 5 : index
    %16 = memref.load %arg6[%c5] : memref<14xf32, #tpu.memory_space<smem>>
    %c6 = arith.constant 6 : index
    %17 = memref.load %arg6[%c6] : memref<14xf32, #tpu.memory_space<smem>>
    %c7 = arith.constant 7 : index
    %18 = memref.load %arg6[%c7] : memref<14xf32, #tpu.memory_space<smem>>
    %c8 = arith.constant 8 : index
    %19 = memref.load %arg6[%c8] : memref<14xf32, #tpu.memory_space<smem>>
    %c9 = arith.constant 9 : index
    %20 = memref.load %arg6[%c9] : memref<14xf32, #tpu.memory_space<smem>>
    %c10 = arith.constant 10 : index
    %21 = memref.load %arg6[%c10] : memref<14xf32, #tpu.memory_space<smem>>
    %c11 = arith.constant 11 : index
    %22 = memref.load %arg6[%c11] : memref<14xf32, #tpu.memory_space<smem>>
    %c12 = arith.constant 12 : index
    %23 = memref.load %arg6[%c12] : memref<14xf32, #tpu.memory_space<smem>>
    %c13 = arith.constant 13 : index
    %24 = memref.load %arg6[%c13] : memref<14xf32, #tpu.memory_space<smem>>
    %25 = tpu.iota {dimensions = array<i32: 1>} : vector<1x128xi32>
    %c-3_i32 = arith.constant -3 : i32
    %26 = vector.broadcast %c-3_i32 : i32 to vector<1x128xi32>
    %27 = arith.addi %25, %26 : vector<1x128xi32>
    %c0_i32 = arith.constant 0 : i32
    %28 = vector.broadcast %c0_i32 : i32 to vector<1x128xi32>
    %29 = arith.cmpi sge, %27, %28 : vector<1x128xi32>
    %c-3_i32_13 = arith.constant -3 : i32
    %30 = vector.broadcast %c-3_i32_13 : i32 to vector<1x128xi32>
    %31 = arith.addi %25, %30 : vector<1x128xi32>
    %c128_i32 = arith.constant 128 : i32
    %32 = vector.broadcast %c128_i32 : i32 to vector<1x128xi32>
    %33 = arith.cmpi slt, %31, %32 : vector<1x128xi32>
    %34 = arith.andi %29, %33 : vector<1x128xi1>
    %c-2_i32 = arith.constant -2 : i32
    %35 = vector.broadcast %c-2_i32 : i32 to vector<1x128xi32>
    %36 = arith.addi %25, %35 : vector<1x128xi32>
    %c0_i32_14 = arith.constant 0 : i32
    %37 = vector.broadcast %c0_i32_14 : i32 to vector<1x128xi32>
    %38 = arith.cmpi sge, %36, %37 : vector<1x128xi32>
    %c-2_i32_15 = arith.constant -2 : i32
    %39 = vector.broadcast %c-2_i32_15 : i32 to vector<1x128xi32>
    %40 = arith.addi %25, %39 : vector<1x128xi32>
    %c128_i32_16 = arith.constant 128 : i32
    %41 = vector.broadcast %c128_i32_16 : i32 to vector<1x128xi32>
    %42 = arith.cmpi slt, %40, %41 : vector<1x128xi32>
    %43 = arith.andi %38, %42 : vector<1x128xi1>
    %c-1_i32 = arith.constant -1 : i32
    %44 = vector.broadcast %c-1_i32 : i32 to vector<1x128xi32>
    %45 = arith.addi %25, %44 : vector<1x128xi32>
    %c0_i32_17 = arith.constant 0 : i32
    %46 = vector.broadcast %c0_i32_17 : i32 to vector<1x128xi32>
    %47 = arith.cmpi sge, %45, %46 : vector<1x128xi32>
    %c-1_i32_18 = arith.constant -1 : i32
    %48 = vector.broadcast %c-1_i32_18 : i32 to vector<1x128xi32>
    %49 = arith.addi %25, %48 : vector<1x128xi32>
    %c128_i32_19 = arith.constant 128 : i32
    %50 = vector.broadcast %c128_i32_19 : i32 to vector<1x128xi32>
    %51 = arith.cmpi slt, %49, %50 : vector<1x128xi32>
    %52 = arith.andi %47, %51 : vector<1x128xi1>
    %c0_i32_20 = arith.constant 0 : i32
    %53 = vector.broadcast %c0_i32_20 : i32 to vector<1x128xi32>
    %54 = arith.addi %25, %53 : vector<1x128xi32>
    %c0_i32_21 = arith.constant 0 : i32
    %55 = vector.broadcast %c0_i32_21 : i32 to vector<1x128xi32>
    %56 = arith.cmpi sge, %54, %55 : vector<1x128xi32>
    %c0_i32_22 = arith.constant 0 : i32
    %57 = vector.broadcast %c0_i32_22 : i32 to vector<1x128xi32>
    %58 = arith.addi %25, %57 : vector<1x128xi32>
    %c128_i32_23 = arith.constant 128 : i32
    %59 = vector.broadcast %c128_i32_23 : i32 to vector<1x128xi32>
    %60 = arith.cmpi slt, %58, %59 : vector<1x128xi32>
    %61 = arith.andi %56, %60 : vector<1x128xi1>
    %c1_i32 = arith.constant 1 : i32
    %62 = vector.broadcast %c1_i32 : i32 to vector<1x128xi32>
    %63 = arith.addi %25, %62 : vector<1x128xi32>
    %c0_i32_24 = arith.constant 0 : i32
    %64 = vector.broadcast %c0_i32_24 : i32 to vector<1x128xi32>
    %65 = arith.cmpi sge, %63, %64 : vector<1x128xi32>
    %c1_i32_25 = arith.constant 1 : i32
    %66 = vector.broadcast %c1_i32_25 : i32 to vector<1x128xi32>
    %67 = arith.addi %25, %66 : vector<1x128xi32>
    %c128_i32_26 = arith.constant 128 : i32
    %68 = vector.broadcast %c128_i32_26 : i32 to vector<1x128xi32>
    %69 = arith.cmpi slt, %67, %68 : vector<1x128xi32>
    %70 = arith.andi %65, %69 : vector<1x128xi1>
    %c2_i32 = arith.constant 2 : i32
    %71 = vector.broadcast %c2_i32 : i32 to vector<1x128xi32>
    %72 = arith.addi %25, %71 : vector<1x128xi32>
    %c0_i32_27 = arith.constant 0 : i32
    %73 = vector.broadcast %c0_i32_27 : i32 to vector<1x128xi32>
    %74 = arith.cmpi sge, %72, %73 : vector<1x128xi32>
    %c2_i32_28 = arith.constant 2 : i32
    %75 = vector.broadcast %c2_i32_28 : i32 to vector<1x128xi32>
    %76 = arith.addi %25, %75 : vector<1x128xi32>
    %c128_i32_29 = arith.constant 128 : i32
    %77 = vector.broadcast %c128_i32_29 : i32 to vector<1x128xi32>
    %78 = arith.cmpi slt, %76, %77 : vector<1x128xi32>
    %79 = arith.andi %74, %78 : vector<1x128xi1>
    %c3_i32 = arith.constant 3 : i32
    %80 = vector.broadcast %c3_i32 : i32 to vector<1x128xi32>
    %81 = arith.addi %25, %80 : vector<1x128xi32>
    %c0_i32_30 = arith.constant 0 : i32
    %82 = vector.broadcast %c0_i32_30 : i32 to vector<1x128xi32>
    %83 = arith.cmpi sge, %81, %82 : vector<1x128xi32>
    %c3_i32_31 = arith.constant 3 : i32
    %84 = vector.broadcast %c3_i32_31 : i32 to vector<1x128xi32>
    %85 = arith.addi %25, %84 : vector<1x128xi32>
    %c128_i32_32 = arith.constant 128 : i32
    %86 = vector.broadcast %c128_i32_32 : i32 to vector<1x128xi32>
    %87 = arith.cmpi slt, %85, %86 : vector<1x128xi32>
    %88 = arith.andi %83, %87 : vector<1x128xi1>
    %c0_33 = arith.constant 0 : index
    %c0_34 = arith.constant 0 : index
    %89 = vector.load %arg8[%c0_33, %c0_34] : memref<32x128xf32, #tpu.memory_space<vmem>>, vector<32x128xf32>
    %cst_35 = arith.constant dense<0.000000e+00> : vector<32xf32>
    %90 = vector.multi_reduction <add>, %89, %cst_35 [1] : vector<32x128xf32> to vector<32xf32>
    %91 = vector.shape_cast %90 : vector<32xf32> to vector<32x1xf32>
    %cst_36 = arith.constant 1.280000e+02 : f32
    %92 = vector.broadcast %cst_36 : f32 to vector<32x1xf32>
    %93 = arith.divf %91, %92 : vector<32x1xf32>
    %cst_37 = arith.constant dense<0xFF800000> : vector<32xf32>
    %94 = vector.multi_reduction <maximumf>, %89, %cst_37 [1] : vector<32x128xf32> to vector<32xf32>
    %95 = vector.shape_cast %94 : vector<32xf32> to vector<32x1xf32>
    %cst_38 = arith.constant 0.000000e+00 : f32
    %96 = vector.broadcast %cst_38 : f32 to vector<32x1xf32>
    %97 = vector.extract_strided_slice %9 {offsets = [0, 0], sizes = [32, 1], strides = [1, 1]} : vector<32x2xf32> to vector<32x1xf32>
    %98 = arith.mulf %93, %97 : vector<32x1xf32>
    %cst_39 = arith.constant dense<0.000000e+00> : vector<1xf32>
    %99 = vector.multi_reduction <add>, %98, %cst_39 [0] : vector<32x1xf32> to vector<1xf32>
    %100 = vector.shape_cast %99 : vector<1xf32> to vector<1x1xf32>
    %cst_40 = arith.constant 0.000000e+00 : f32
    %101 = vector.broadcast %cst_40 : f32 to vector<1x1xf32>
    %102 = arith.maximumf %100, %101 : vector<1x1xf32>
    %103 = arith.mulf %95, %97 : vector<32x1xf32>
    %cst_41 = arith.constant dense<0.000000e+00> : vector<1xf32>
    %104 = vector.multi_reduction <add>, %103, %cst_41 [0] : vector<32x1xf32> to vector<1xf32>
    %105 = vector.shape_cast %104 : vector<1xf32> to vector<1x1xf32>
    %cst_42 = arith.constant 0.000000e+00 : f32
    %106 = vector.broadcast %cst_42 : f32 to vector<1x1xf32>
    %107 = arith.maximumf %105, %106 : vector<1x1xf32>
    %108 = vector.extract_strided_slice %10 {offsets = [0, 0], sizes = [32, 1], strides = [1, 1]} : vector<32x2xf32> to vector<32x1xf32>
    %109 = arith.addf %102, %107 : vector<1x1xf32>
    %110 = vector.broadcast %109 : vector<1x1xf32> to vector<32x1xf32>
    %111 = arith.mulf %108, %110 : vector<32x1xf32>
    %112 = arith.addf %96, %111 : vector<32x1xf32>
    %113 = vector.extract_strided_slice %9 {offsets = [0, 1], sizes = [32, 1], strides = [1, 1]} : vector<32x2xf32> to vector<32x1xf32>
    %114 = arith.mulf %93, %113 : vector<32x1xf32>
    %cst_43 = arith.constant dense<0.000000e+00> : vector<1xf32>
    %115 = vector.multi_reduction <add>, %114, %cst_43 [0] : vector<32x1xf32> to vector<1xf32>
    %116 = vector.shape_cast %115 : vector<1xf32> to vector<1x1xf32>
    %cst_44 = arith.constant 0.000000e+00 : f32
    %117 = vector.broadcast %cst_44 : f32 to vector<1x1xf32>
    %118 = arith.maximumf %116, %117 : vector<1x1xf32>
    %119 = arith.mulf %95, %113 : vector<32x1xf32>
    %cst_45 = arith.constant dense<0.000000e+00> : vector<1xf32>
    %120 = vector.multi_reduction <add>, %119, %cst_45 [0] : vector<32x1xf32> to vector<1xf32>
    %121 = vector.shape_cast %120 : vector<1xf32> to vector<1x1xf32>
    %cst_46 = arith.constant 0.000000e+00 : f32
    %122 = vector.broadcast %cst_46 : f32 to vector<1x1xf32>
    %123 = arith.maximumf %121, %122 : vector<1x1xf32>
    %124 = vector.extract_strided_slice %10 {offsets = [0, 1], sizes = [32, 1], strides = [1, 1]} : vector<32x2xf32> to vector<32x1xf32>
    %125 = arith.addf %118, %123 : vector<1x1xf32>
    %126 = vector.broadcast %125 : vector<1x1xf32> to vector<32x1xf32>
    %127 = arith.mulf %124, %126 : vector<32x1xf32>
    %128 = arith.addf %112, %127 : vector<32x1xf32>
    %129 = arith.negf %128 : vector<32x1xf32>
    %130 = math.exp %129 : vector<32x1xf32>
    %cst_47 = arith.constant 1.000000e+00 : f32
    %131 = vector.broadcast %cst_47 : f32 to vector<32x1xf32>
    %132 = arith.addf %131, %130 : vector<32x1xf32>
    %133 = arith.divf %131, %132 : vector<32x1xf32>
    %134 = vector.broadcast %133 : vector<32x1xf32> to vector<32x128xf32>
    %135 = arith.mulf %89, %134 : vector<32x128xf32>
    %cst_48 = arith.constant dense<0.000000e+00> : vector<128xf32>
    %136 = vector.multi_reduction <add>, %135, %cst_48 [0] : vector<32x128xf32> to vector<128xf32>
    %137 = vector.shape_cast %136 : vector<128xf32> to vector<1x128xf32>
    %cst_49 = arith.constant dense<0xFF800000> : vector<128xf32>
    %138 = vector.multi_reduction <maximumf>, %135, %cst_49 [0] : vector<32x128xf32> to vector<128xf32>
    %139 = vector.shape_cast %138 : vector<128xf32> to vector<1x128xf32>
    %140 = tpu.concatenate %137, %139 in 0 : vector<1x128xf32>, vector<1x128xf32> -> vector<2x128xf32>
    %cst_50 = arith.constant 0.000000e+00 : f32
    %141 = vector.broadcast %cst_50 : f32 to vector<1x128xf32>
    %c3_i32_51 = arith.constant 3 : i32
    %142 = tpu.dynamic_rotate %140 by %c3_i32_51 dim 1 : vector<2x128xf32>, i32 -> vector<2x128xf32>
    %143 = vector.extract_strided_slice %142 {offsets = [0, 0], sizes = [1, 128], strides = [1, 1]} : vector<2x128xf32> to vector<1x128xf32>
    %144 = vector.broadcast %11 : f32 to vector<1x128xf32>
    %145 = arith.mulf %144, %143 : vector<1x128xf32>
    %146 = vector.extract_strided_slice %142 {offsets = [1, 0], sizes = [1, 128], strides = [1, 1]} : vector<2x128xf32> to vector<1x128xf32>
    %147 = vector.broadcast %18 : f32 to vector<1x128xf32>
    %148 = arith.mulf %147, %146 : vector<1x128xf32>
    %149 = arith.addf %145, %148 : vector<1x128xf32>
    %cst_52 = arith.constant 0.000000e+00 : f32
    %150 = vector.broadcast %cst_52 : f32 to vector<1x128xf32>
    %151 = arith.select %34, %149, %150 : vector<1x128xi1>, vector<1x128xf32>
    %152 = arith.addf %141, %151 : vector<1x128xf32>
    %c2_i32_53 = arith.constant 2 : i32
    %153 = tpu.dynamic_rotate %140 by %c2_i32_53 dim 1 : vector<2x128xf32>, i32 -> vector<2x128xf32>
    %154 = vector.extract_strided_slice %153 {offsets = [0, 0], sizes = [1, 128], strides = [1, 1]} : vector<2x128xf32> to vector<1x128xf32>
    %155 = vector.broadcast %12 : f32 to vector<1x128xf32>
    %156 = arith.mulf %155, %154 : vector<1x128xf32>
    %157 = vector.extract_strided_slice %153 {offsets = [1, 0], sizes = [1, 128], strides = [1, 1]} : vector<2x128xf32> to vector<1x128xf32>
    %158 = vector.broadcast %19 : f32 to vector<1x128xf32>
    %159 = arith.mulf %158, %157 : vector<1x128xf32>
    %160 = arith.addf %156, %159 : vector<1x128xf32>
    %cst_54 = arith.constant 0.000000e+00 : f32
    %161 = vector.broadcast %cst_54 : f32 to vector<1x128xf32>
    %162 = arith.select %43, %160, %161 : vector<1x128xi1>, vector<1x128xf32>
    %163 = arith.addf %152, %162 : vector<1x128xf32>
    %c1_i32_55 = arith.constant 1 : i32
    %164 = tpu.dynamic_rotate %140 by %c1_i32_55 dim 1 : vector<2x128xf32>, i32 -> vector<2x128xf32>
    %165 = vector.extract_strided_slice %164 {offsets = [0, 0], sizes = [1, 128], strides = [1, 1]} : vector<2x128xf32> to vector<1x128xf32>
    %166 = vector.broadcast %13 : f32 to vector<1x128xf32>
    %167 = arith.mulf %166, %165 : vector<1x128xf32>
    %168 = vector.extract_strided_slice %164 {offsets = [1, 0], sizes = [1, 128], strides = [1, 1]} : vector<2x128xf32> to vector<1x128xf32>
    %169 = vector.broadcast %20 : f32 to vector<1x128xf32>
    %170 = arith.mulf %169, %168 : vector<1x128xf32>
    %171 = arith.addf %167, %170 : vector<1x128xf32>
    %cst_56 = arith.constant 0.000000e+00 : f32
    %172 = vector.broadcast %cst_56 : f32 to vector<1x128xf32>
    %173 = arith.select %52, %171, %172 : vector<1x128xi1>, vector<1x128xf32>
    %174 = arith.addf %163, %173 : vector<1x128xf32>
    %c0_i32_57 = arith.constant 0 : i32
    %175 = tpu.dynamic_rotate %140 by %c0_i32_57 dim 1 : vector<2x128xf32>, i32 -> vector<2x128xf32>
    %176 = vector.extract_strided_slice %175 {offsets = [0, 0], sizes = [1, 128], strides = [1, 1]} : vector<2x128xf32> to vector<1x128xf32>
    %177 = vector.broadcast %14 : f32 to vector<1x128xf32>
    %178 = arith.mulf %177, %176 : vector<1x128xf32>
    %179 = vector.extract_strided_slice %175 {offsets = [1, 0], sizes = [1, 128], strides = [1, 1]} : vector<2x128xf32> to vector<1x128xf32>
    %180 = vector.broadcast %21 : f32 to vector<1x128xf32>
    %181 = arith.mulf %180, %179 : vector<1x128xf32>
    %182 = arith.addf %178, %181 : vector<1x128xf32>
    %cst_58 = arith.constant 0.000000e+00 : f32
    %183 = vector.broadcast %cst_58 : f32 to vector<1x128xf32>
    %184 = arith.select %61, %182, %183 : vector<1x128xi1>, vector<1x128xf32>
    %185 = arith.addf %174, %184 : vector<1x128xf32>
    %c127_i32 = arith.constant 127 : i32
    %186 = tpu.dynamic_rotate %140 by %c127_i32 dim 1 : vector<2x128xf32>, i32 -> vector<2x128xf32>
    %187 = vector.extract_strided_slice %186 {offsets = [0, 0], sizes = [1, 128], strides = [1, 1]} : vector<2x128xf32> to vector<1x128xf32>
    %188 = vector.broadcast %15 : f32 to vector<1x128xf32>
    %189 = arith.mulf %188, %187 : vector<1x128xf32>
    %190 = vector.extract_strided_slice %186 {offsets = [1, 0], sizes = [1, 128], strides = [1, 1]} : vector<2x128xf32> to vector<1x128xf32>
    %191 = vector.broadcast %22 : f32 to vector<1x128xf32>
    %192 = arith.mulf %191, %190 : vector<1x128xf32>
    %193 = arith.addf %189, %192 : vector<1x128xf32>
    %cst_59 = arith.constant 0.000000e+00 : f32
    %194 = vector.broadcast %cst_59 : f32 to vector<1x128xf32>
    %195 = arith.select %70, %193, %194 : vector<1x128xi1>, vector<1x128xf32>
    %196 = arith.addf %185, %195 : vector<1x128xf32>
    %c126_i32 = arith.constant 126 : i32
    %197 = tpu.dynamic_rotate %140 by %c126_i32 dim 1 : vector<2x128xf32>, i32 -> vector<2x128xf32>
    %198 = vector.extract_strided_slice %197 {offsets = [0, 0], sizes = [1, 128], strides = [1, 1]} : vector<2x128xf32> to vector<1x128xf32>
    %199 = vector.broadcast %16 : f32 to vector<1x128xf32>
    %200 = arith.mulf %199, %198 : vector<1x128xf32>
    %201 = vector.extract_strided_slice %197 {offsets = [1, 0], sizes = [1, 128], strides = [1, 1]} : vector<2x128xf32> to vector<1x128xf32>
    %202 = vector.broadcast %23 : f32 to vector<1x128xf32>
    %203 = arith.mulf %202, %201 : vector<1x128xf32>
    %204 = arith.addf %200, %203 : vector<1x128xf32>
    %cst_60 = arith.constant 0.000000e+00 : f32
    %205 = vector.broadcast %cst_60 : f32 to vector<1x128xf32>
    %206 = arith.select %79, %204, %205 : vector<1x128xi1>, vector<1x128xf32>
    %207 = arith.addf %196, %206 : vector<1x128xf32>
    %c125_i32 = arith.constant 125 : i32
    %208 = tpu.dynamic_rotate %140 by %c125_i32 dim 1 : vector<2x128xf32>, i32 -> vector<2x128xf32>
    %209 = vector.extract_strided_slice %208 {offsets = [0, 0], sizes = [1, 128], strides = [1, 1]} : vector<2x128xf32> to vector<1x128xf32>
    %210 = vector.broadcast %17 : f32 to vector<1x128xf32>
    %211 = arith.mulf %210, %209 : vector<1x128xf32>
    %212 = vector.extract_strided_slice %208 {offsets = [1, 0], sizes = [1, 128], strides = [1, 1]} : vector<2x128xf32> to vector<1x128xf32>
    %213 = vector.broadcast %24 : f32 to vector<1x128xf32>
    %214 = arith.mulf %213, %212 : vector<1x128xf32>
    %215 = arith.addf %211, %214 : vector<1x128xf32>
    %cst_61 = arith.constant 0.000000e+00 : f32
    %216 = vector.broadcast %cst_61 : f32 to vector<1x128xf32>
    %217 = arith.select %88, %215, %216 : vector<1x128xi1>, vector<1x128xf32>
    %218 = arith.addf %207, %217 : vector<1x128xf32>
    %219 = arith.negf %218 : vector<1x128xf32>
    %220 = math.exp %219 : vector<1x128xf32>
    %cst_62 = arith.constant 1.000000e+00 : f32
    %221 = vector.broadcast %cst_62 : f32 to vector<1x128xf32>
    %222 = arith.addf %221, %220 : vector<1x128xf32>
    %223 = arith.divf %221, %222 : vector<1x128xf32>
    %224 = vector.broadcast %223 : vector<1x128xf32> to vector<32x128xf32>
    %225 = arith.mulf %135, %224 : vector<32x128xf32>
    %c0_63 = arith.constant 0 : index
    %c0_64 = arith.constant 0 : index
    %c0_65 = arith.constant 0 : index
    %226 = vector.load %arg7[%c0_63, %c0_64, %c0_65] : memref<1x32x128xf32, #tpu.memory_space<vmem>>, vector<1x32x128xf32>
    %227 = vector.shape_cast %226 : vector<1x32x128xf32> to vector<32x128xf32>
    %228 = vector.shape_cast %225 : vector<32x128xf32> to vector<1x32x128xf32>
    tpu.vector_store %arg7[%c0_63, %c0_64, %c0_65], %228 {strides = array<i32>} : memref<1x32x128xf32, #tpu.memory_space<vmem>>, vector<1x32x128xf32>,
    return
  }
  func.func @transform_0(%arg0: i32) -> (i32, i32) {
    %c0_i32 = arith.constant 0 : i32
    %c0_i32_0 = arith.constant 0 : i32
    return %c0_i32, %arg0 : i32, i32
  }
  func.func @transform_1(%arg0: i32) -> (i32, i32) {
    %c0_i32 = arith.constant 0 : i32
    %c0_i32_0 = arith.constant 0 : i32
    %c0_i32_1 = arith.constant 0 : i32
    return %c0_i32, %c0_i32_0 : i32, i32
  }
  func.func @transform_2(%arg0: i32) -> (i32, i32) {
    %c0_i32 = arith.constant 0 : i32
    %c0_i32_0 = arith.constant 0 : i32
    %c0_i32_1 = arith.constant 0 : i32
    return %c0_i32, %c0_i32_0 : i32, i32
  }
  func.func @transform_3(%arg0: i32) -> (i32, i32) {
    %c0_i32 = arith.constant 0 : i32
    %c0_i32_0 = arith.constant 0 : i32
    %c0_i32_1 = arith.constant 0 : i32
    return %c0_i32, %c0_i32_0 : i32, i32
  }
  func.func @transform_4(%arg0: i32) -> (i32, i32) {
    %c0_i32 = arith.constant 0 : i32
    %c0_i32_0 = arith.constant 0 : i32
    %c0_i32_1 = arith.constant 0 : i32
    return %c0_i32, %c0_i32_0 : i32, i32
  }
  func.func @transform_5(%arg0: i32) -> i32 {
    %c0_i32 = arith.constant 0 : i32
    %c0_i32_0 = arith.constant 0 : i32
    return %c0_i32 : i32
  }
  func.func @transform_6(%arg0: i32) -> (i32, i32, i32) {
    %c0_i32 = arith.constant 0 : i32
    %c0_i32_0 = arith.constant 0 : i32
    %c0_i32_1 = arith.constant 0 : i32
    return %arg0, %c0_i32, %c0_i32_0 : i32, i32, i32
  }
}

</mosaic_0001>

<llo_original>
// kernel: tpu_custom_call.1
$region0: #{tpu_custom_call.1}
  #allocation0 [shape = 'u32[]', space=smem, size = 0x4, offset = 0x4, fixed_abs, tag = 'smem constant byte address 0x4 - core index']
  #allocation1 [shape = 'u32[72,128]{1,0:T(1,128)}', space=vmem, size = 0x9000, scoped, tag = 'internal scratch']
  #allocation2 [shape = 'f32[32,128]{1,0:T(8,128)}', space=vmem, size = 0x4000, scoped, tag = 'scratch operand']
  %s0 = inlined_call_operand.hbm [shape: bf16[28,1024], index: 0, kind: input, shape index: {}]
  %s1 = inlined_call_operand.vmem [shape: bf16[32,28], index: 1, kind: input, shape index: {}]
  %s2 = inlined_call_operand.vmem [shape: f32[32,1], index: 2, kind: input, shape index: {}]
  %s3 = inlined_call_operand.vmem [shape: f32[32,2], index: 3, kind: input, shape index: {}]
  %s4 = inlined_call_operand.vmem [shape: f32[32,2], index: 4, kind: input, shape index: {}]
  %s5 = inlined_call_operand.vmem [shape: f32[14], index: 5, kind: input, shape index: {}]
  %s6 = inlined_call_operand.hbm [shape: f32[8,32,128], index: 6, kind: output, shape index: {}]
  %s7 = sld [smem:[#allocation0]]
  $region65: #{tpu_custom_call.1} parent=0
    _
  %s9 = ssub.s32 1, %s7
  %s10 = scalar_select 0, %s9, %s7
  $region1: #{tpu_custom_call.1} parent=0
    #allocation3 [shape = 'u8[16384]{0}', space=vmem, size = 0x4000, scoped, tag = 'input window, operand 0']
    #allocation4 [shape = 's32[2]{0}', space=sflag, size = 0x8, scoped, tag = 'scoped memory for tpu_custom_call.1']
    #allocation5 [shape = 's32[2]{0}', space=sflag, size = 0x8, scoped, tag = 'scoped memory for tpu_custom_call.1']
    #allocation6 [shape = 's32[2]{0}', space=sflag, size = 0x8, scoped, tag = 'scoped memory for tpu_custom_call.1']
    #allocation7 [shape = 'u8[512]{0}', space=smem, size = 0x200, scoped, tag = 'input window, operand 5, single buffered']
    #allocation8 [shape = 'u8[32768]{0}', space=vmem, size = 0x8000, scoped, tag = 'output window, operand 0']
    %11 = vsyncpa [#allocation4], 0
    %s12 = scalar_lea.sflag [#allocation4], 1
    %13 = vsyncpa %s12, 0
    %14 = vsyncpa [#allocation6], 0
    %15 = vsyncpa [#allocation5], 0
    %s16 = scalar_lea.sflag [#allocation5], 1
    %17 = vsyncpa %s16, 0
    loop: start=0, step=1, limit=10
    $region2: #{tpu_custom_call.1} parent=1 // loop_pre_header
      _
    $region3: #{tpu_custom_call.1} parent=1 // loop_header
      %s19 = sphi 0, %s23
      %p20 = scmp.ge.s32.totalorder %s19, 10
      %s29 = sphi 0, %s31
      %s32 = sphi 0, %s29
      %s33 = sphi 0, %s32
      %s49 = sphi 0, %s33
      %s53 = sphi 0, %s53
      %s55 = sphi 0, %s53
      %s56 = sphi 0, %s55
      %s70 = sphi 0, %s56
      %s74 = sphi 0, %s74
      %s76 = sphi 0, %s74
      %s77 = sphi 0, %s76
      %s91 = sphi 0, %s77
      %s95 = sphi 0, %s95
      %s97 = sphi 0, %s95
      %s98 = sphi 0, %s97
      %s112 = sphi 0, %s98
      %s116 = sphi 0, %s116
      %s118 = sphi 0, %s116
      %s119 = sphi 0, %s118
      %s133 = sphi 0, %s119
      %s137 = sphi 0, %s137
      %s139 = sphi 0, %s137
      %s140 = sphi 0, %s139
      %s154 = sphi 0, %s140
      %s160 = sphi 0, %s162
      %s163 = sphi 0, %s160
      %s164 = sphi 0, %s163
      %s180 = sphi 0, %s164
    $region4: #{tpu_custom_call.1} parent=1 // loop_header_branch
      %22 = sbr.rel (%p20) target = $region8
    $region5: #{tpu_custom_call.1} parent=1 // loop_body
      %s24 = ssub.s32 %s19, 1
      %s25 = ssub.s32 %s19, 2
      %s26 = sadd.s32 %s19, 1
      %s27 = ssub.s32 %s19, %s26
      %p28 = scmp.eq.s32.totalorder %s27, 0
      %s30 = sadd.s32 %s29, 1
      %s31 = scalar_select %p28, %s29, %s30
      %p34 = pneg %p28
      %p35 = scmp.eq.s32.totalorder %s19, 7
      %p36 = por %p34, %p35
      %p37 = scmp.ne.s32.totalorder %s29, %s32
      %p38 = scmp.eq.s32.totalorder %s19, 0
      %p39 = por %p37, %p38
      %p40 = scmp.ne.s32.totalorder %s29, %s32
      %p41 = scmp.eq.s32.totalorder %s24, 7
      %p42 = por %p40, %p41
      %p43 = scmp.ne.s32.totalorder %s32, %s33
      %p44 = scmp.eq.s32.totalorder %s24, 0
      %p45 = por %p43, %p44
      %p46 = scmp.ne.s32.totalorder %s32, %s33
      %p47 = scmp.eq.s32.totalorder %s25, 7
      %p48 = por %p46, %p47
      %p50 = scmp.ne.s32.totalorder %s33, %s49
      %p51 = scmp.eq.s32.totalorder %s25, 0
      %p52 = por %p50, %p51
      %s54 = sadd.s32 %s53, 1
      %p57 = scmp.eq.s32.totalorder %s19, 7
      %p58 = scmp.ne.s32.totalorder %s53, %s55
      %p59 = scmp.eq.s32.totalorder %s19, 0
      %p60 = por %p58, %p59
      %p61 = scmp.ne.s32.totalorder %s53, %s55
      %p62 = scmp.eq.s32.totalorder %s24, 7
      %p63 = por %p61, %p62
      %p64 = scmp.ne.s32.totalorder %s55, %s56
      %p65 = scmp.eq.s32.totalorder %s24, 0
      %p66 = por %p64, %p65
      %p67 = scmp.ne.s32.totalorder %s55, %s56
      %p68 = scmp.eq.s32.totalorder %s25, 7
      %p69 = por %p67, %p68
      %p71 = scmp.ne.s32.totalorder %s56, %s70
      %p72 = scmp.eq.s32.totalorder %s25, 0
      %p73 = por %p71, %p72
      %s75 = sadd.s32 %s74, 1
      %p78 = scmp.eq.s32.totalorder %s19, 7
      %p79 = scmp.ne.s32.totalorder %s74, %s76
      %p80 = scmp.eq.s32.totalorder %s19, 0
      %p81 = por %p79, %p80
      %p82 = scmp.ne.s32.totalorder %s74, %s76
      %p83 = scmp.eq.s32.totalorder %s24, 7
      %p84 = por %p82, %p83
      %p85 = scmp.ne.s32.totalorder %s76, %s77
      %p86 = scmp.eq.s32.totalorder %s24, 0
      %p87 = por %p85, %p86
      %p88 = scmp.ne.s32.totalorder %s76, %s77
      %p89 = scmp.eq.s32.totalorder %s25, 7
      %p90 = por %p88, %p89
      %p92 = scmp.ne.s32.totalorder %s77, %s91
      %p93 = scmp.eq.s32.totalorder %s25, 0
      %p94 = por %p92, %p93
      %s96 = sadd.s32 %s95, 1
      %p99 = scmp.eq.s32.totalorder %s19, 7
      %p100 = scmp.ne.s32.totalorder %s95, %s97
      %p101 = scmp.eq.s32.totalorder %s19, 0
      %p102 = por %p100, %p101
      %p103 = scmp.ne.s32.totalorder %s95, %s97
      %p104 = scmp.eq.s32.totalorder %s24, 7
      %p105 = por %p103, %p104
      %p106 = scmp.ne.s32.totalorder %s97, %s98
      %p107 = scmp.eq.s32.totalorder %s24, 0
      %p108 = por %p106, %p107
      %p109 = scmp.ne.s32.totalorder %s97, %s98
      %p110 = scmp.eq.s32.totalorder %s25, 7
      %p111 = por %p109, %p110
      %p113 = scmp.ne.s32.totalorder %s98, %s112
      %p114 = scmp.eq.s32.totalorder %s25, 0
      %p115 = por %p113, %p114
      %s117 = sadd.s32 %s116, 1
      %p120 = scmp.eq.s32.totalorder %s19, 7
      %p121 = scmp.ne.s32.totalorder %s116, %s118
      %p122 = scmp.eq.s32.totalorder %s19, 0
      %p123 = por %p121, %p122
      %p124 = scmp.ne.s32.totalorder %s116, %s118
      %p125 = scmp.eq.s32.totalorder %s24, 7
      %p126 = por %p124, %p125
      %p127 = scmp.ne.s32.totalorder %s118, %s119
      %p128 = scmp.eq.s32.totalorder %s24, 0
      %p129 = por %p127, %p128
      %p130 = scmp.ne.s32.totalorder %s118, %s119
      %p131 = scmp.eq.s32.totalorder %s25, 7
      %p132 = por %p130, %p131
      %p134 = scmp.ne.s32.totalorder %s119, %s133
      %p135 = scmp.eq.s32.totalorder %s25, 0
      %p136 = por %p134, %p135
      %s138 = sadd.s32 %s137, 1
      %p141 = scmp.eq.s32.totalorder %s19, 7
      %p142 = scmp.ne.s32.totalorder %s137, %s139
      %p143 = scmp.eq.s32.totalorder %s19, 0
      %p144 = por %p142, %p143
      %p145 = scmp.ne.s32.totalorder %s137, %s139
      %p146 = scmp.eq.s32.totalorder %s24, 7
      %p147 = por %p145, %p146
      %p148 = scmp.ne.s32.totalorder %s139, %s140
      %p149 = scmp.eq.s32.totalorder %s24, 0
      %p150 = por %p148, %p149
      %p151 = scmp.ne.s32.totalorder %s139, %s140
      %p152 = scmp.eq.s32.totalorder %s25, 7
      %p153 = por %p151, %p152
      %p155 = scmp.ne.s32.totalorder %s140, %s154
      %p156 = scmp.eq.s32.totalorder %s25, 0
      %p157 = por %p155, %p156
      %s158 = ssub.s32 %s19, %s26
      %p159 = scmp.eq.s32.totalorder %s158, 0
      %s161 = sadd.s32 %s160, 1
      %s162 = scalar_select %p159, %s160, %s161
      %p165 = pneg %p159
      %p166 = scmp.eq.s32.totalorder %s19, 7
      %p167 = por %p165, %p166
      %p168 = scmp.ne.s32.totalorder %s160, %s163
      %p169 = scmp.eq.s32.totalorder %s19, 0
      %p170 = por %p168, %p169
      %p171 = scmp.ne.s32.totalorder %s160, %s163
      %p172 = scmp.eq.s32.totalorder %s24, 7
      %p173 = por %p171, %p172
      %p174 = scmp.ne.s32.totalorder %s163, %s164
      %p175 = scmp.eq.s32.totalorder %s24, 0
      %p176 = por %p174, %p175
      %p177 = scmp.ne.s32.totalorder %s163, %s164
      %p178 = scmp.eq.s32.totalorder %s25, 7
      %p179 = por %p177, %p178
      %p181 = scmp.ne.s32.totalorder %s164, %s180
      %p182 = scmp.eq.s32.totalorder %s25, 0
      %p183 = por %p181, %p182
      %p184 = scmp.le.s32.totalorder 1, %s19
      %p185 = scmp.lt.s32.totalorder %s19, 9
      %p186 = pnand %p184, %p185
      %p187 = pneg %p186
      // Predicated region
      $region9: #{tpu_custom_call.1} parent=5 // pred_check
        _
      $region10: #{tpu_custom_call.1} parent=5 // pred_check_branch
        %189 = sbr.rel (%p186) target = $region12
      $region11: #{tpu_custom_call.1} parent=5 // pred_region
        %s190 = ssub.s32 %s19, 1
        // Predicated region
        $region13: #{tpu_custom_call.1} parent=11 // pred_check
          %p191 = pneg %p66
        $region14: #{tpu_custom_call.1} parent=11 // pred_check_branch
          %193 = sbr.rel (%p191) target = $region16
        $region15: #{tpu_custom_call.1} parent=11 // pred_region
          _
        $region16: #{tpu_custom_call.1} parent=11 // pred_fallthru
          _
        // Predicated region
        $region17: #{tpu_custom_call.1} parent=11 // pred_check
          %p194 = pneg %p87
        $region18: #{tpu_custom_call.1} parent=11 // pred_check_branch
          %196 = sbr.rel (%p194) target = $region20
        $region19: #{tpu_custom_call.1} parent=11 // pred_region
          _
        $region20: #{tpu_custom_call.1} parent=11 // pred_fallthru
          _
        // Predicated region
        $region21: #{tpu_custom_call.1} parent=11 // pred_check
          %p197 = pneg %p108
        $region22: #{tpu_custom_call.1} parent=11 // pred_check_branch
          %199 = sbr.rel (%p197) target = $region24
        $region23: #{tpu_custom_call.1} parent=11 // pred_region
          _
        $region24: #{tpu_custom_call.1} parent=11 // pred_fallthru
          _
        // Predicated region
        $region25: #{tpu_custom_call.1} parent=11 // pred_check
          %p200 = pneg %p129
        $region26: #{tpu_custom_call.1} parent=11 // pred_check_branch
          %202 = sbr.rel (%p200) target = $region28
        $region27: #{tpu_custom_call.1} parent=11 // pred_region
          _
        $region28: #{tpu_custom_call.1} parent=11 // pred_fallthru
          _
        // Predicated region
        $region29: #{tpu_custom_call.1} parent=11 // pred_check
          %p203 = pneg %p150
        $region30: #{tpu_custom_call.1} parent=11 // pred_check_branch
          %205 = sbr.rel (%p203) target = $region32
        $region31: #{tpu_custom_call.1} parent=11 // pred_region
          %207 = vsyncadd [#allocation6], 0
          %s209 = sshll.u32 %s5, 4
          %s210 = int_to_ptr.vmem [resolvable:$true] %s209
          %212 = dma.vmem_to_smem %s210, 16, [#allocation7], [#allocation6]
        $region32: #{tpu_custom_call.1} parent=11 // pred_fallthru
          _
      $region12: #{tpu_custom_call.1} parent=5 // pred_fallthru
        _
      %p213 = scmp.lt.s32.totalorder %s19, 8
      // Predicated region
      $region33: #{tpu_custom_call.1} parent=5 // pred_check
        %p214 = pneg %p213
      $region34: #{tpu_custom_call.1} parent=5 // pred_check_branch
        %216 = sbr.rel (%p214) target = $region36
      $region35: #{tpu_custom_call.1} parent=5 // pred_region
        // Predicated region
        $region37: #{tpu_custom_call.1} parent=35 // pred_check
          %p217 = pneg %p39
        $region38: #{tpu_custom_call.1} parent=35 // pred_check_branch
          %219 = sbr.rel (%p217) target = $region40
        $region39: #{tpu_custom_call.1} parent=35 // pred_region
          %s220 = sand.u32 %s29, 1
          %s221 = scalar_lea.sflag [#allocation4], %s220
          %s222 = sand.u32 %s29, 1
          %s223 = smul.addr %s222, 16
          %s224 = scalar_lea.vmem [#allocation3], %s223
          %226 = vsyncadd %s221, 0
          %s227 = smul.addr %s19, 4
          %s228 = scalar_lea.hbm %s0, %s227
          %s229 = sshll.u32 %s228, 4
          %s230 = int_to_ptr.hbm [resolvable:$true] %s229
          %s231 = sshll.u32 %s224, 4
          %s232 = int_to_ptr.vmem [resolvable:$true] %s231
          %237 = dma.hbm_to_vmem [thread:$0]  %s230, 256, %s232, %s221, 512, 64, 4
        $region40: #{tpu_custom_call.1} parent=35 // pred_fallthru
          _
      $region36: #{tpu_custom_call.1} parent=5 // pred_fallthru
        _
      %p238 = scmp.le.s32.totalorder 1, %s19
      %p239 = scmp.lt.s32.totalorder %s19, 9
      %p240 = pnand %p238, %p239
      %p241 = pneg %p240
      // Predicated region
      $region41: #{tpu_custom_call.1} parent=5 // pred_check
        _
      $region42: #{tpu_custom_call.1} parent=5 // pred_check_branch
        %243 = sbr.rel (%p240) target = $region44
      $region43: #{tpu_custom_call.1} parent=5 // pred_region
        %s244 = ssub.s32 %s19, 1
        %s245 = sand.u32 %s32, 1
        %s246 = scalar_lea.sflag [#allocation4], %s245
        %s247 = sand.u32 %s32, 1
        %s248 = smul.addr %s247, 16
        %s249 = scalar_lea.vmem [#allocation3], %s248
        // Predicated region
        $region45: #{tpu_custom_call.1} parent=43 // pred_check
          %p250 = pneg %p45
        $region46: #{tpu_custom_call.1} parent=43 // pred_check_branch
          %252 = sbr.rel (%p250) target = $region48
        $region47: #{tpu_custom_call.1} parent=43 // pred_region
          %254 = dma.done %s246, 256
        $region48: #{tpu_custom_call.1} parent=43 // pred_fallthru
          _
        // Predicated region
        $region49: #{tpu_custom_call.1} parent=43 // pred_check
          %p255 = pneg %p150
        $region50: #{tpu_custom_call.1} parent=43 // pred_check_branch
          %257 = sbr.rel (%p255) target = $region52
        $region51: #{tpu_custom_call.1} parent=43 // pred_region
          %259 = dma.done [#allocation6], 16
        $region52: #{tpu_custom_call.1} parent=43 // pred_fallthru
          _
        %260 = sfence
        %s261 = sand.u32 %s32, 1
        %s262 = scalar_lea.sflag [#allocation4], %s261
        %s263 = sand.u32 %s32, 1
        %s264 = smul.addr %s263, 16
        %s265 = scalar_lea.vmem [#allocation3], %s264
        %p266 = pneg %p45
        %p267 = pneg %p42
        %p268 = pneg %p66
        %p269 = pneg %p63
        %p270 = pneg %p87
        %p271 = pneg %p84
        %p272 = pneg %p108
        %p273 = pneg %p105
        %p274 = pneg %p129
        %p275 = pneg %p126
        %p276 = pneg %p150
        %p277 = pneg %p147
        %p278 = pneg %p176
        %p279 = pneg %p173
        %s280 = sand.u32 %s163, 1
        %s281 = scalar_lea.sflag [#allocation5], %s280
        %s282 = sand.u32 %s163, 1
        %s283 = smul.addr %s282, 32
        %s284 = scalar_lea.vmem [#allocation8], %s283
        %v286 = vld [vmem:[%s1] sm:$0xf]
        %v287 = vld [vmem:[%s1 + $0x4] sm:$0xf]
        %v288 = vld [vmem:[%s1 + $0x8] sm:$0xf]
        %v289 = vld [vmem:[%s1 + $0xc] sm:$0xf]
        %v290 = vld [vmem:[%s249] sm:$0xf]
        %v291 = vld [vmem:[%s249 + $0x4] sm:$0xf]
        %v292 = vld [vmem:[%s249 + $0x8] sm:$0xf]
        %v293 = vld [vmem:[%s249 + $0xc] sm:$0x3]
        %v294 = vld [vmem:[%s2] sm:$0xff]
        %v295 = vld [vmem:[%s2 + $0x8] sm:$0xff]
        %v296 = vld [vmem:[%s2 + $0x10] sm:$0xff]
        %v297 = vld [vmem:[%s2 + $0x18] sm:$0xff]
        %299 = vset.pattern.permute.xlu0 0
        %300 = vperm.xlu0 %299, %v294
        %v301 = vpop.permute.xlu0 %300
        %304 = vset.pattern.permute.xlu0 0
        %305 = vperm.xlu0 %304, %v295
        %v306 = vpop.permute.xlu0 %305
        %309 = vset.pattern.permute.xlu0 0
        %310 = vperm.xlu0 %309, %v296
        %v311 = vpop.permute.xlu0 %310
        %314 = vset.pattern.permute.xlu0 0
        %315 = vperm.xlu0 %314, %v297
        %v316 = vpop.permute.xlu0 %315
        %v322 = vunpack.c.l.b16 %v286
        %v323 = vunpack.c.l.b16 %v287
        %v324 = vunpack.c.l.b16 %v288
        %v325 = vunpack.c.l.b16 %v289
        %v326 = vpack.c.b16 %v323, %v322
        %v327 = vpack.c.b16 %v325, %v324
        %v332 = vunpack.c.l.b16 %v290
        %v333 = vunpack.c.l.b16 %v291
        %v334 = vunpack.c.l.b16 %v292
        %v335 = vunpack.c.l.b16 %v293
        %v336 = vpack.c.b16 %v333, %v332
        %v337 = vpack.c.b16 %v335, %v334
        %vm339 = vcmask 228352
        %v341 = vsel %vm339, %v326, 0
        %v344 = vsel %vm339, %v327, 0
        %vm346 = vcmask 1045504
        %v348 = vsel %vm346, %v337, 0
        %350 = vmatpush.bf16.msra.mxu0 0
        %351 = vmatpush.bf16.msra.mxu0 0
        %352 = vmatpush.bf16.msra.mxu0 0
        %353 = vmatpush.bf16.msra.mxu0 0
        %354 = vmatpush.bf16.msra.mxu0 0
        %355 = vmatpush.bf16.msra.mxu0 0
        %356 = vmatpush.bf16.msra.mxu0 %v348
        %357 = vmatpush.bf16.msra.mxu0 %v336
        %358 = vmatmul.bf16.gmra.mxu0 %v341
        %v359 = vpop.f32.mrf.mxu0
        %v360 = vadd.f32 %v301, %v359
        %v361 = vpop.f32.mrf.mxu0
        %v362 = vadd.f32 %v306, %v361
        %363 = vmatmul.bf16.gmra.mxu0 %v344
        %v364 = vpop.f32.mrf.mxu0
        %v365 = vadd.f32 %v311, %v364
        %v366 = vpop.f32.mrf.mxu0
        %v367 = vadd.f32 %v316, %v366
        %368 = vdwg.mxu0
        %v369 = vmax.f32 %v360, 0.0
        %v370 = vmax.f32 %v362, 0.0
        %v371 = vmax.f32 %v365, 0.0
        %v372 = vmax.f32 %v367, 0.0
        %373 = vst [vmem:[#allocation2] sm:$0xff] %v369
        %374 = vst [vmem:[#allocation2 + $0x8] sm:$0xff] %v370
        %375 = vst [vmem:[#allocation2 + $0x10] sm:$0xff] %v371
        %376 = vst [vmem:[#allocation2 + $0x18] sm:$0xff] %v372
        %v377 = vld [vmem:[%s3] sm:$0xff]
        %v378 = vld [vmem:[%s3 + $0x8] sm:$0xff]
        %v379 = vld [vmem:[%s3 + $0x10] sm:$0xff]
        %v380 = vld [vmem:[%s3 + $0x18] sm:$0xff]
        %v381 = vld [vmem:[%s4] sm:$0xff]
        %v382 = vld [vmem:[%s4 + $0x8] sm:$0xff]
        %v383 = vld [vmem:[%s4 + $0x10] sm:$0xff]
        %v384 = vld [vmem:[%s4 + $0x18] sm:$0xff]
        %s385 = sld [smem:[#allocation7]]
        %s386 = sld [smem:[#allocation7 + $0x1]]
        %s387 = sld [smem:[#allocation7 + $0x2]]
        %s388 = sld [smem:[#allocation7 + $0x3]]
        %s389 = sld [smem:[#allocation7 + $0x4]]
        %s390 = sld [smem:[#allocation7 + $0x5]]
        %s391 = sld [smem:[#allocation7 + $0x6]]
        %s392 = sld [smem:[#allocation7 + $0x7]]
        %s393 = sld [smem:[#allocation7 + $0x8]]
        %s394 = sld [smem:[#allocation7 + $0x9]]
        %s395 = sld [smem:[#allocation7 + $0xa]]
        %s396 = sld [smem:[#allocation7 + $0xb]]
        %s397 = sld [smem:[#allocation7 + $0xc]]
        %s398 = sld [smem:[#allocation7 + $0xd]]
        %v399 = vlaneseq
        %v400 = vand.u32 %v399, 127
        %v401 = vadd.s32 %v400, 4294967293
        %vm402 = vcmp.ge.s32.totalorder %v401, 0
        %vm403 = vcmp.lt.s32.totalorder %v401, 128
        %vm404 = vmand %vm402, %vm403
        %v405 = vadd.s32 %v400, 4294967294
        %vm406 = vcmp.ge.s32.totalorder %v405, 0
        %vm407 = vcmp.lt.s32.totalorder %v405, 128
        %vm408 = vmand %vm406, %vm407
        %v409 = vadd.s32 %v400, 4294967295
        %vm410 = vcmp.ge.s32.totalorder %v409, 0
        %vm411 = vcmp.lt.s32.totalorder %v409, 128
        %vm412 = vmand %vm410, %vm411
        %vm413 = vcmp.ge.s32.totalorder %v400, 0
        %vm414 = vcmp.lt.s32.totalorder %v400, 128
        %vm415 = vmand %vm413, %vm414
        %v416 = vadd.s32 %v400, 1
        %vm417 = vcmp.ge.s32.totalorder %v416, 0
        %vm418 = vcmp.lt.s32.totalorder %v416, 128
        %vm419 = vmand %vm417, %vm418
        %v420 = vadd.s32 %v400, 2
        %vm421 = vcmp.ge.s32.totalorder %v420, 0
        %vm422 = vcmp.lt.s32.totalorder %v420, 128
        %vm423 = vmand %vm421, %vm422
        %v424 = vadd.s32 %v400, 3
        %vm425 = vcmp.ge.s32.totalorder %v424, 0
        %vm426 = vcmp.lt.s32.totalorder %v424, 128
        %vm427 = vmand %vm425, %vm426
        %v428 = vld [vmem:[#allocation2] sm:$0xff]
        %v429 = vld [vmem:[#allocation2 + $0x8] sm:$0xff]
        %v430 = vld [vmem:[#allocation2 + $0x10] sm:$0xff]
        %v431 = vld [vmem:[#allocation2 + $0x18] sm:$0xff]
        %432 = vadd.xlane.f32.xlu0 %v428
        %v433 = vpop.xlane.xlu0 %432
        %434 = vadd.xlane.f32.xlu0 %v429
        %v435 = vpop.xlane.xlu0 %434
        %436 = vadd.xlane.f32.xlu0 %v430
        %v437 = vpop.xlane.xlu0 %436
        %438 = vadd.xlane.f32.xlu0 %v431
        %v439 = vpop.xlane.xlu0 %438
        %v440 = vrcp.pop 128.0
        %v441 = vmul.f32 128.0, %v440
        %v442 = vsub.f32 1.0, %v441
        %v443 = vmul.f32 %v440, %v442
        %v444 = vadd.f32 %v440, %v443
        %vm445 = vweird.f32 %v440
        %v446 = vsel %vm445, %v440, %v444
        %v447 = vmul.f32 %v433, %v446
        %v448 = vmul.f32 %v435, %v446
        %v449 = vmul.f32 %v437, %v446
        %v450 = vmul.f32 %v439, %v446
        %451 = vmax.xlane.f32.xlu0 %v428
        %v452 = vpop.xlane.xlu0 %451
        %453 = vmax.xlane.f32.xlu0 %v429
        %v454 = vpop.xlane.xlu0 %453
        %455 = vmax.xlane.f32.xlu0 %v430
        %v456 = vpop.xlane.xlu0 %455
        %457 = vmax.xlane.f32.xlu0 %v431
        %v458 = vpop.xlane.xlu0 %457
        %v459 = vmul.f32 %v447, %v377
        %v460 = vmul.f32 %v448, %v378
        %v461 = vmul.f32 %v449, %v379
        %v462 = vmul.f32 %v450, %v380
        %vm463 = vcmask 7168
        %v464 = vsel %vm463, %v459, 0.0
        %v465 = vsel %vm463, %v460, 0.0
        %v466 = vadd.f32 %v464, %v465
        %v467 = vsel %vm463, %v461, 0.0
        %v468 = vadd.f32 %v466, %v467
        %v469 = vsel %vm463, %v462, 0.0
        %v470 = vadd.f32 %v468, %v469
        %v471 = vrot.slane %v470, 4
        %v472 = vadd.f32 %v470, %v471
        %v473 = vrot.slane %v472, 2
        %v474 = vadd.f32 %v472, %v473
        %v475 = vrot.slane %v474, 1
        %v476 = vadd.f32 %v474, %v475
        %v477 = vmax.f32 %v476, 0.0
        %v478 = vmul.f32 %v452, %v377
        %v479 = vmul.f32 %v454, %v378
        %v480 = vmul.f32 %v456, %v379
        %v481 = vmul.f32 %v458, %v380
        %v482 = vsel %vm463, %v478, 0.0
        %v483 = vsel %vm463, %v479, 0.0
        %v484 = vadd.f32 %v482, %v483
        %v485 = vsel %vm463, %v480, 0.0
        %v486 = vadd.f32 %v484, %v485
        %v487 = vsel %vm463, %v481, 0.0
        %v488 = vadd.f32 %v486, %v487
        %v489 = vrot.slane %v488, 4
        %v490 = vadd.f32 %v488, %v489
        %v491 = vrot.slane %v490, 2
        %v492 = vadd.f32 %v490, %v491
        %v493 = vrot.slane %v492, 1
        %v494 = vadd.f32 %v492, %v493
        %v495 = vmax.f32 %v494, 0.0
        %v496 = vadd.f32 %v477, %v495
        %v497 = vmul.f32 %v381, %v496
        %v498 = vmul.f32 %v382, %v496
        %v499 = vmul.f32 %v383, %v496
        %v500 = vmul.f32 %v384, %v496
        %v501 = vadd.f32 %v497, 0.0
        %v502 = vadd.f32 %v498, 0.0
        %v503 = vadd.f32 %v499, 0.0
        %v504 = vadd.f32 %v500, 0.0
        %vm505 = vcmask 15368
        %v506 = vsel %vm505, %v459, 0.0
        %v507 = vsel %vm505, %v460, 0.0
        %v508 = vadd.f32 %v506, %v507
        %v509 = vsel %vm505, %v461, 0.0
        %v510 = vadd.f32 %v508, %v509
        %v511 = vsel %vm505, %v462, 0.0
        %v512 = vadd.f32 %v510, %v511
        %v513 = vrot.slane %v512, 4
        %v514 = vadd.f32 %v512, %v513
        %v515 = vrot.slane %v514, 2
        %v516 = vadd.f32 %v514, %v515
        %v517 = vrot.slane %v516, 1
        %v518 = vadd.f32 %v516, %v517
        %v519 = vmax.f32 %v518, 0.0
        %v520 = vsel %vm505, %v478, 0.0
        %v521 = vsel %vm505, %v479, 0.0
        %v522 = vadd.f32 %v520, %v521
        %v523 = vsel %vm505, %v480, 0.0
        %v524 = vadd.f32 %v522, %v523
        %v525 = vsel %vm505, %v481, 0.0
        %v526 = vadd.f32 %v524, %v525
        %v527 = vrot.slane %v526, 4
        %v528 = vadd.f32 %v526, %v527
        %v529 = vrot.slane %v528, 2
        %v530 = vadd.f32 %v528, %v529
        %v531 = vrot.slane %v530, 1
        %v532 = vadd.f32 %v530, %v531
        %v533 = vmax.f32 %v532, 0.0
        %v534 = vadd.f32 %v519, %v533
        %v535 = vmul.f32 %v381, %v534
        %v536 = vmul.f32 %v382, %v534
        %v537 = vmul.f32 %v383, %v534
        %v538 = vmul.f32 %v384, %v534
        %543 = vrot.lane.b32.xlu0 %v535, 127
        %v544 = vpop.permute.xlu0 %543
        %545 = vrot.lane.b32.xlu0 %v536, 127
        %v546 = vpop.permute.xlu0 %545
        %547 = vrot.lane.b32.xlu0 %v537, 127
        %v548 = vpop.permute.xlu0 %547
        %549 = vrot.lane.b32.xlu0 %v538, 127
        %v550 = vpop.permute.xlu0 %549
        %v555 = vadd.f32 %v501, %v544
        %v556 = vadd.f32 %v502, %v546
        %v557 = vadd.f32 %v503, %v548
        %v558 = vadd.f32 %v504, %v550
        %v559 = vxor.u32 %v555, 2147483648
        %v560 = vxor.u32 %v556, 2147483648
        %v561 = vxor.u32 %v557, 2147483648
        %v562 = vxor.u32 %v558, 2147483648
        %v563 = vmul.f32 %v559, 1.442695
        %v564 = vpow.pop %v563
        %v565 = vmul.f32 %v560, 1.442695
        %v566 = vpow.pop %v565
        %v567 = vmul.f32 %v561, 1.442695
        %v568 = vpow.pop %v567
        %v569 = vmul.f32 %v562, 1.442695
        %v570 = vpow.pop %v569
        %v571 = vadd.f32 %v564, 1.0
        %v572 = vadd.f32 %v566, 1.0
        %v573 = vadd.f32 %v568, 1.0
        %v574 = vadd.f32 %v570, 1.0
        %v575 = vrcp.pop %v571
        %v576 = vmul.f32 %v571, %v575
        %v577 = vsub.f32 1.0, %v576
        %v578 = vmul.f32 %v575, %v577
        %v579 = vadd.f32 %v575, %v578
        %vm580 = vweird.f32 %v571
        %vm581 = vweird.f32 %v575
        %vm582 = vmor %vm580, %vm581
        %v583 = vsel %vm582, %v575, %v579
        %v584 = vand.u32 2147483647, %v571
        %vm585 = vcmp.eq.f32.partialorder %v584, 8.507059e+37
        %v586 = vand.u32 %v571, 2147483648
        %v587 = vor.u32 1.1754944e-38, %v586
        %v588 = vsel %vm585, %v587, %v583
        %v589 = vmul.f32 1.0, %v588
        %v590 = vrcp.pop %v572
        %v591 = vmul.f32 %v572, %v590
        %v592 = vsub.f32 1.0, %v591
        %v593 = vmul.f32 %v590, %v592
        %v594 = vadd.f32 %v590, %v593
        %vm595 = vweird.f32 %v572
        %vm596 = vweird.f32 %v590
        %vm597 = vmor %vm595, %vm596
        %v598 = vsel %vm597, %v590, %v594
        %v599 = vand.u32 2147483647, %v572
        %vm600 = vcmp.eq.f32.partialorder %v599, 8.507059e+37
        %v601 = vand.u32 %v572, 2147483648
        %v602 = vor.u32 1.1754944e-38, %v601
        %v603 = vsel %vm600, %v602, %v598
        %v604 = vmul.f32 1.0, %v603
        %v605 = vrcp.pop %v573
        %v606 = vmul.f32 %v573, %v605
        %v607 = vsub.f32 1.0, %v606
        %v608 = vmul.f32 %v605, %v607
        %v609 = vadd.f32 %v605, %v608
        %vm610 = vweird.f32 %v573
        %vm611 = vweird.f32 %v605
        %vm612 = vmor %vm610, %vm611
        %v613 = vsel %vm612, %v605, %v609
        %v614 = vand.u32 2147483647, %v573
        %vm615 = vcmp.eq.f32.partialorder %v614, 8.507059e+37
        %v616 = vand.u32 %v573, 2147483648
        %v617 = vor.u32 1.1754944e-38, %v616
        %v618 = vsel %vm615, %v617, %v613
        %v619 = vmul.f32 1.0, %v618
        %v620 = vrcp.pop %v574
        %v621 = vmul.f32 %v574, %v620
        %v622 = vsub.f32 1.0, %v621
        %v623 = vmul.f32 %v620, %v622
        %v624 = vadd.f32 %v620, %v623
        %vm625 = vweird.f32 %v574
        %vm626 = vweird.f32 %v620
        %vm627 = vmor %vm625, %vm626
        %v628 = vsel %vm627, %v620, %v624
        %v629 = vand.u32 2147483647, %v574
        %vm630 = vcmp.eq.f32.partialorder %v629, 8.507059e+37
        %v631 = vand.u32 %v574, 2147483648
        %v632 = vor.u32 1.1754944e-38, %v631
        %v633 = vsel %vm630, %v632, %v628
        %v634 = vmul.f32 1.0, %v633
        %636 = vset.pattern.permute.xlu0 0
        %637 = vperm.xlu0 %636, %v589
        %v638 = vpop.permute.xlu0 %637
        %641 = vset.pattern.permute.xlu0 0
        %642 = vperm.xlu0 %641, %v604
        %v643 = vpop.permute.xlu0 %642
        %646 = vset.pattern.permute.xlu0 0
        %647 = vperm.xlu0 %646, %v619
        %v648 = vpop.permute.xlu0 %647
        %651 = vset.pattern.permute.xlu0 0
        %652 = vperm.xlu0 %651, %v634
        %v653 = vpop.permute.xlu0 %652
        %v655 = vmul.f32 %v428, %v638
        %v656 = vmul.f32 %v429, %v643
        %v657 = vmul.f32 %v430, %v648
        %v658 = vmul.f32 %v431, %v653
        %v659 = vadd.f32 %v655, %v656
        %v660 = vadd.f32 %v659, %v657
        %v661 = vadd.f32 %v660, %v658
        %v662 = vrot.slane %v661, 4
        %v663 = vadd.f32 %v661, %v662
        %v664 = vrot.slane %v663, 2
        %v665 = vadd.f32 %v663, %v664
        %v666 = vrot.slane %v665, 1
        %v667 = vadd.f32 %v665, %v666
        %v668 = vmax.f32 %v655, %v656
        %v669 = vmax.f32 %v657, %v658
        %v670 = vmax.f32 %v668, %v669
        %v671 = vrot.slane %v670, 4
        %v672 = vmax.f32 %v670, %v671
        %v673 = vrot.slane %v672, 2
        %v674 = vmax.f32 %v672, %v673
        %v675 = vrot.slane %v674, 1
        %v676 = vmax.f32 %v674, %v675
        %vm677 = vcmask 1040384
        %v678 = vsel %vm677, %v667, %v676
        %679 = vrot.lane.b32.xlu0 %v678, 3
        %v680 = vpop.permute.xlu0 %679
        %v681 = vstv %s385
        %v682 = vmul.f32 %v681, %v680
        %v683 = vstv %s392
        %v684 = vmul.f32 %v683, %v680
        %v686 = vrot.slane %v684, 1
        %v688 = vadd.f32 %v682, %v686
        %v689 = vsel %vm404, %v688, 0.0
        %v690 = vadd.f32 %v689, 0.0
        %691 = vrot.lane.b32.xlu0 %v678, 2
        %v692 = vpop.permute.xlu0 %691
        %v693 = vstv %s386
        %v694 = vmul.f32 %v693, %v692
        %v695 = vstv %s393
        %v696 = vmul.f32 %v695, %v692
        %v698 = vrot.slane %v696, 1
        %v700 = vadd.f32 %v694, %v698
        %v701 = vsel %vm408, %v700, 0.0
        %v702 = vadd.f32 %v690, %v701
        %703 = vrot.lane.b32.xlu0 %v678, 1
        %v704 = vpop.permute.xlu0 %703
        %v705 = vstv %s387
        %v706 = vmul.f32 %v705, %v704
        %v707 = vstv %s394
        %v708 = vmul.f32 %v707, %v704
        %v710 = vrot.slane %v708, 1
        %v712 = vadd.f32 %v706, %v710
        %v713 = vsel %vm412, %v712, 0.0
        %v714 = vadd.f32 %v702, %v713
        %v715 = vstv %s388
        %v716 = vmul.f32 %v715, %v678
        %v717 = vstv %s395
        %v718 = vmul.f32 %v717, %v678
        %v720 = vrot.slane %v718, 1
        %v722 = vadd.f32 %v716, %v720
        %v723 = vsel %vm415, %v722, 0.0
        %v724 = vadd.f32 %v714, %v723
        %725 = vrot.lane.b32.xlu0 %v678, 127
        %v726 = vpop.permute.xlu0 %725
        %v727 = vstv %s389
        %v728 = vmul.f32 %v727, %v726
        %v729 = vstv %s396
        %v730 = vmul.f32 %v729, %v726
        %v732 = vrot.slane %v730, 1
        %v734 = vadd.f32 %v728, %v732
        %v735 = vsel %vm419, %v734, 0.0
        %v736 = vadd.f32 %v724, %v735
        %737 = vrot.lane.b32.xlu0 %v678, 126
        %v738 = vpop.permute.xlu0 %737
        %v739 = vstv %s390
        %v740 = vmul.f32 %v739, %v738
        %v741 = vstv %s397
        %v742 = vmul.f32 %v741, %v738
        %v744 = vrot.slane %v742, 1
        %v746 = vadd.f32 %v740, %v744
        %v747 = vsel %vm423, %v746, 0.0
        %v748 = vadd.f32 %v736, %v747
        %749 = vrot.lane.b32.xlu0 %v678, 125
        %v750 = vpop.permute.xlu0 %749
        %v751 = vstv %s391
        %v752 = vmul.f32 %v751, %v750
        %v753 = vstv %s398
        %v754 = vmul.f32 %v753, %v750
        %v756 = vrot.slane %v754, 1
        %v758 = vadd.f32 %v752, %v756
        %v759 = vsel %vm427, %v758, 0.0
        %v760 = vadd.f32 %v748, %v759
        %v761 = vxor.u32 %v760, 2147483648
        %v762 = vmul.f32 %v761, 1.442695
        %v763 = vpow.pop %v762
        %v764 = vadd.f32 %v763, 1.0
        %v765 = vrcp.pop %v764
        %v766 = vmul.f32 %v764, %v765
        %v767 = vsub.f32 1.0, %v766
        %v768 = vmul.f32 %v765, %v767
        %v769 = vadd.f32 %v765, %v768
        %vm770 = vweird.f32 %v764
        %vm771 = vweird.f32 %v765
        %vm772 = vmor %vm770, %vm771
        %v773 = vsel %vm772, %v765, %v769
        %v774 = vand.u32 2147483647, %v764
        %vm775 = vcmp.eq.f32.partialorder %v774, 8.507059e+37
        %v776 = vand.u32 %v764, 2147483648
        %v777 = vor.u32 1.1754944e-38, %v776
        %v778 = vsel %vm775, %v777, %v773
        %v779 = vmul.f32 1.0, %v778
        %v780 = vperm.slane %v779, 0
        %v781 = vmul.f32 %v655, %v780
        %v782 = vmul.f32 %v656, %v780
        %v783 = vmul.f32 %v657, %v780
        %v784 = vmul.f32 %v658, %v780
        %785 = vst [vmem:[%s284] sm:$0xff] %v781
        %786 = vst [vmem:[%s284 + $0x8] sm:$0xff] %v782
        %787 = vst [vmem:[%s284 + $0x10] sm:$0xff] %v783
        %788 = vst [vmem:[%s284 + $0x18] sm:$0xff] %v784
        %s789 = sand.u32 %s163, 1
        %s790 = scalar_lea.sflag [#allocation5], %s789
        %s791 = sand.u32 %s163, 1
        %s792 = smul.addr %s791, 32
        %s793 = scalar_lea.vmem [#allocation8], %s792
        // Predicated region
        $region53: #{tpu_custom_call.1} parent=43 // pred_check
          %p794 = pneg %p173
        $region54: #{tpu_custom_call.1} parent=43 // pred_check_branch
          %796 = sbr.rel (%p794) target = $region56
        $region55: #{tpu_custom_call.1} parent=43 // pred_region
          %798 = vsyncadd %s790, 0
          %s799 = smul.addr %s24, 4
          %s800 = smul.addr %s799, 8
          %s801 = scalar_lea.hbm %s6, %s800
          %s802 = sshll.u32 %s793, 4
          %s803 = int_to_ptr.vmem [resolvable:$true] %s802
          %s804 = sshll.u32 %s801, 4
          %s805 = int_to_ptr.hbm [resolvable:$true] %s804
          %810 = dma.vmem_to_hbm [thread:$0]  %s803, 512, %s805, %s790, 128, 128, 8
        $region56: #{tpu_custom_call.1} parent=43 // pred_fallthru
          _
      $region44: #{tpu_custom_call.1} parent=5 // pred_fallthru
        _
      %p811 = scmp.le.s32.totalorder 2, %s19
      // Predicated region
      $region57: #{tpu_custom_call.1} parent=5 // pred_check
        %p812 = pneg %p811
      $region58: #{tpu_custom_call.1} parent=5 // pred_check_branch
        %814 = sbr.rel (%p812) target = $region60
      $region59: #{tpu_custom_call.1} parent=5 // pred_region
        %s815 = ssub.s32 %s19, 2
        // Predicated region
        $region61: #{tpu_custom_call.1} parent=59 // pred_check
          %p816 = pneg %p179
        $region62: #{tpu_custom_call.1} parent=59 // pred_check_branch
          %818 = sbr.rel (%p816) target = $region64
        $region63: #{tpu_custom_call.1} parent=59 // pred_region
          %s819 = sand.u32 %s164, 1
          %s820 = scalar_lea.sflag [#allocation5], %s819
          %s821 = sand.u32 %s164, 1
          %s822 = smul.addr %s821, 32
          %s823 = scalar_lea.vmem [#allocation8], %s822
          %825 = dma.done %s820, 512
        $region64: #{tpu_custom_call.1} parent=59 // pred_fallthru
          _
      $region60: #{tpu_custom_call.1} parent=5 // pred_fallthru
        _
    $region6: #{tpu_custom_call.1} parent=1 // loop_footer
      %s23 = sadd.s32 1, %s19
    $region7: #{tpu_custom_call.1} parent=1 // loop_footer_branch
      %18 = sbr.rel target = $region3
    $region8: #{tpu_custom_call.1} parent=1 // loop_exit
      _
    %826 = vsyncpa [#allocation4], 1
    %s827 = scalar_lea.sflag [#allocation4], 1
    %828 = vsyncpa %s827, 1
    %829 = vsyncpa [#allocation5], 1
    %s830 = scalar_lea.sflag [#allocation5], 1
    %831 = vsyncpa %s830, 1
    %832 = vsyncpa [#allocation6], 1
    %s833 = scalar_lea.sflag [#allocation6], 1
    %834 = vsyncpa %s833, 1

</llo_original>
